<compile_context>
chip_gen: v6e
topology: v6e:2x2x1
jax: 0.10.0
libtpu: 0.0.40
codegen_flags: <defaults>
</compile_context>

<pallas_src>
import jax
import jax.numpy as jnp
from jax.experimental import pallas as pl
from jax.experimental.pallas import tpu as pltpu

_LANE = 128          # TPU lane width; pad narrow feature dims up to this.
_MAX_TILE_B = 4096   # Upper bound on the batch tile (rows per grid step).


def _round_up(n, m):
    return (n + m - 1) // m * m


# ----------------------------------------------------------------------------
# Kernel: four fused (Linear -> folded-BN -> ReLU) stages + final Linear.
# ----------------------------------------------------------------------------
def classification_head_kernel(
    x_ref,
    w1, b1, w2, b2, w3, b3, w4, b4, w5, b5,
    out_ref,
):
    def fused(h, w_ref, b_ref):
        # MXU matmul with f32 accumulation; bias + ReLU in f32; cast back to
        # bf16 for the next MXU stage.  (Dropout = identity in eval mode.)
        z = jnp.dot(h, w_ref[...], preferred_element_type=jnp.float32) + b_ref[...]
        return jnp.maximum(z, 0.0).astype(jnp.bfloat16)

    h = x_ref[...]                     # f32 straight from HBM (no wrapper cast)
    h = fused(h, w1, b1)               # fc1 + bn1 + relu  (f32 x @ f32 w1, tiny K)
    h = fused(h, w2, b2)               # fc2 + bn2 + relu  (bf16 MXU)
    h = fused(h, w3, b3)               # fc3 + bn3 + relu
    h = fused(h, w4, b4)               # fc4 + bn4 + relu
    out = jnp.dot(h, w5[...], preferred_element_type=jnp.float32) + b5[...]   # fc5
    out_ref[...] = out.astype(out_ref.dtype)      # bf16, lane-dense store


# ----------------------------------------------------------------------------
# Parameter folding: BN(scale, shift) -> weights/bias, zero-pad to lane width.
# Layer 1 weights stay f32 (x enters in f32); layers 2-5 are cast to bf16.
# Biases stay f32 (bias-add + ReLU are done in f32).
# ----------------------------------------------------------------------------
def fold_params(params, *, weight_dtype=jnp.bfloat16):
    folded = {}
    for layer in range(1, 6):
        w = params[f"w{layer}"].astype(jnp.float32)   # (in, out)
        b = params[f"b{layer}"].astype(jnp.float32)   # (1, out)
        if f"s{layer}" in params:                     # eval-mode BN folded in
            s = params[f"s{layer}"].astype(jnp.float32)
            t = params[f"t{layer}"].astype(jnp.float32)
            w = w * s                                 # per-output-column rescale
            b = b * s + t
        in_dim, out_dim = w.shape
        out_pad = _round_up(out_dim, _LANE)
        in_pad = in_dim if layer == 1 else _round_up(in_dim, _LANE)
        w = jnp.pad(w, ((0, in_pad - in_dim), (0, out_pad - out_dim)))
        b = jnp.pad(b, ((0, 0), (0, out_pad - out_dim)))
        folded[f"w{layer}"] = w if layer == 1 else w.astype(weight_dtype)
        folded[f"b{layer}"] = b                       # f32
    return folded


# ----------------------------------------------------------------------------
# Wrapper: batch tiling, padding, pallas_call.
# ----------------------------------------------------------------------------
def classification_head(x, params, *, tile_b=None,
                        weight_dtype=jnp.bfloat16,
                        vmem_limit_bytes=48 * 1024 * 1024):
    """x: (B, input_dim) float32. params: dict from init_params (PyTorch-like)."""
    B, input_dim = x.shape
    output_dim = params["w5"].shape[1]

    folded = fold_params(params, weight_dtype=weight_dtype)
    out_pad = folded["b5"].shape[1]          # lane-dense (128-padded) output width

    # Batch tile: big tiles amortize the ~0.35 us/step overhead; keep >= 2
    # near-equal grid steps for v7x megacore when B is large enough, and never
    # pad B by more than (roughly) one tile.
    if tile_b is None:
        if B <= 256:
            tile_b = _round_up(B, 8)
        else:
            n_tiles = max(2, pl.cdiv(B, _MAX_TILE_B))
            tile_b = _round_up(pl.cdiv(B, n_tiles), 256)
    tile_b = max(8, _round_up(tile_b, 8))
    B_pad = _round_up(B, tile_b)

    x = x.astype(jnp.float32)                # no-op for f32 inputs; kernel reads f32
    if B_pad != B:
        x = jnp.pad(x, ((0, B_pad - B), (0, 0)))   # small: < one tile of rows

    flat = [folded[k] for l in range(1, 6) for k in (f"w{l}", f"b{l}")]

    grid = (B_pad // tile_b,)
    x_spec = pl.BlockSpec((tile_b, input_dim), lambda i: (i, 0))
    # Params are tiny and resident in VMEM: same (constant) block every step.
    param_specs = [pl.BlockSpec(p.shape, lambda i: (0, 0)) for p in flat]
    out_spec = pl.BlockSpec((tile_b, out_pad), lambda i: (i, 0))

    out = pl.pallas_call(
        classification_head_kernel,
        out_shape=jax.ShapeDtypeStruct((B_pad, out_pad), jnp.bfloat16),
        grid_spec=pltpu.PrefetchScalarGridSpec(
            num_scalar_prefetch=0,
            grid=grid,
            in_specs=[x_spec] + param_specs,
            out_specs=out_spec,
        ),
        compiler_params=pltpu.CompilerParams(
            dimension_semantics=("parallel",),
            vmem_limit_bytes=vmem_limit_bytes,
        ),
    )(x, *flat)

    # Slice the real logits and restore the module's f32 output dtype
    # (tiny (B, output_dim) slice -> negligible).
    return out[:B, :output_dim].astype(jnp.float32)


# ----------------------------------------------------------------------------
# Deterministic parameter init (mirrors the PyTorch __init__ shapes) + reference.
# ----------------------------------------------------------------------------
def init_params(key, input_dim, output_dim):
    dims = [input_dim, 256, 128, 64, 32, output_dim]
    eps = 1e-5
    params = {}
    keys = jax.random.split(key, 5 * 2 + 4 * 4)
    ki = 0

    def nextkey():
        nonlocal ki
        k = keys[ki]
        ki += 1
        return k

    for layer in range(1, 6):
        fan_in, fan_out = dims[layer - 1], dims[layer]
        bound = 1.0 / jnp.sqrt(jnp.float32(fan_in))
        # PyTorch nn.Linear stores (out, in); we keep (in, out) for `x @ W`.
        w = jax.random.uniform(nextkey(), (fan_in, fan_out),
                               minval=-bound, maxval=bound, dtype=jnp.float32)
        b = jax.random.uniform(nextkey(), (1, fan_out),
                               minval=-bound, maxval=bound, dtype=jnp.float32)
        params[f"w{layer}"] = w
        params[f"b{layer}"] = b

        if layer <= 4:
            # BatchNorm1d(fan_out) params + running stats, folded for eval mode:
            #   y = (z - mean)/sqrt(var+eps) * gamma + beta  ==  z * s + t
            gamma = 1.0 + 0.1 * jax.random.normal(nextkey(), (1, fan_out), jnp.float32)
            beta = 0.1 * jax.random.normal(nextkey(), (1, fan_out), jnp.float32)
            mean = 0.1 * jax.random.normal(nextkey(), (1, fan_out), jnp.float32)
            var = 1.0 + 0.1 * jnp.abs(jax.random.normal(nextkey(), (1, fan_out), jnp.float32))
            s = gamma / jnp.sqrt(var + eps)
            t = beta - mean * s
            params[f"s{layer}"] = s
            params[f"t{layer}"] = t
    return params


def reference_forward(x, params):
    """Pure-JAX f32 reference of the same eval-mode forward."""
    h = x
    for layer in range(1, 5):
        z = h @ params[f"w{layer}"] + params[f"b{layer}"]
        z = z * params[f"s{layer}"] + params[f"t{layer}"]
        h = jnp.maximum(z, 0.0)
    return h @ params["w5"] + params["b5"]


# TODO(synk): training-mode Dropout (RNG mask) and batch-statistics BatchNorm are not
# implemented; this kernel matches the module's eval-mode forward.

if __name__ == "__main__":
    input_dim, output_dim = 32, 10

    key = jax.random.PRNGKey(0)
    kp, k1, k2, k3 = jax.random.split(key, 4)
    params = init_params(kp, input_dim, output_dim)

    # Small sanity check (single small tile, no padding).
    x = jax.random.normal(k1, (8, input_dim), dtype=jnp.float32)
    out = jax.block_until_ready(classification_head(x, params))
    ref = reference_forward(x, params)
    assert out.shape == (8, output_dim)
    assert jnp.allclose(out, ref, atol=5e-2, rtol=5e-2), "mismatch vs JAX reference (small)"

    # Medium batch: 2-step grid (tile_b auto = 512), batch padding 1000 -> 1024.
    x2 = jax.random.normal(k2, (1000, input_dim), dtype=jnp.float32)
    out2 = jax.block_until_ready(classification_head(x2, params))
    ref2 = reference_forward(x2, params)
    assert out2.shape == (1000, output_dim)
    assert jnp.allclose(out2, ref2, atol=5e-2, rtol=5e-2), "mismatch vs JAX reference (medium)"

    # Larger batch: exercises the bigger auto tile (tile_b = 1536) and padding.
    x3 = jax.random.normal(k3, (3000, input_dim), dtype=jnp.float32)
    out3 = jax.block_until_ready(classification_head(x3, params))
    ref3 = reference_forward(x3, params)
    assert out3.shape == (3000, output_dim)
    assert jnp.allclose(out3, ref3, atol=5e-2, rtol=5e-2), "mismatch vs JAX reference (large)"

    print("KERNEL_OK")
</pallas_src>

<mosaic_0001>
module attributes {stable_mosaic.version = 11 : i64} {
  func.func @classification_head_kernel(%arg0: i32, %arg1: memref<8x32xf32, #tpu.memory_space<vmem>>, %arg2: memref<32x256xf32, #tpu.memory_space<vmem>>, %arg3: memref<1x256xf32, #tpu.memory_space<vmem>>, %arg4: memref<256x128xbf16, #tpu.memory_space<vmem>>, %arg5: memref<1x128xf32, #tpu.memory_space<vmem>>, %arg6: memref<128x128xbf16, #tpu.memory_space<vmem>>, %arg7: memref<1x128xf32, #tpu.memory_space<vmem>>, %arg8: memref<128x128xbf16, #tpu.memory_space<vmem>>, %arg9: memref<1x128xf32, #tpu.memory_space<vmem>>, %arg10: memref<128x128xbf16, #tpu.memory_space<vmem>>, %arg11: memref<1x128xf32, #tpu.memory_space<vmem>>, %arg12: memref<8x128xbf16, #tpu.memory_space<vmem>>) attributes {dimension_semantics = [#tpu.dimension_semantics<parallel>], iteration_bounds = array<i64: 1>, scalar_prefetch = 0 : i64, scratch_operands = 0 : i64, tpu.core_type = #tpu.core_type<tc>, window_params = [{transform_indices = @transform_0, window_bounds = array<i64: 8, 32>}, {pipeline_mode = #tpu.pipeline_mode<synchronous>, transform_indices = @transform_1, window_bounds = array<i64: 32, 256>}, {pipeline_mode = #tpu.pipeline_mode<synchronous>, transform_indices = @transform_2, window_bounds = array<i64: 1, 256>}, {pipeline_mode = #tpu.pipeline_mode<synchronous>, transform_indices = @transform_3, window_bounds = array<i64: 256, 128>}, {pipeline_mode = #tpu.pipeline_mode<synchronous>, transform_indices = @transform_4, window_bounds = array<i64: 1, 128>}, {pipeline_mode = #tpu.pipeline_mode<synchronous>, transform_indices = @transform_5, window_bounds = array<i64: 128, 128>}, {pipeline_mode = #tpu.pipeline_mode<synchronous>, transform_indices = @transform_6, window_bounds = array<i64: 1, 128>}, {pipeline_mode = #tpu.pipeline_mode<synchronous>, transform_indices = @transform_7, window_bounds = array<i64: 128, 128>}, {pipeline_mode = #tpu.pipeline_mode<synchronous>, transform_indices = @transform_8, window_bounds = array<i64: 1, 128>}, {pipeline_mode = #tpu.pipeline_mode<synchronous>, transform_indices = @transform_9, window_bounds = array<i64: 128, 128>}, {pipeline_mode = #tpu.pipeline_mode<synchronous>, transform_indices = @transform_10, window_bounds = array<i64: 1, 128>}, {transform_indices = @transform_11, window_bounds = array<i64: 8, 128>}]} {
    %c0 = arith.constant 0 : index
    %c0_0 = arith.constant 0 : index
    %0 = vector.load %arg1[%c0, %c0_0] : memref<8x32xf32, #tpu.memory_space<vmem>>, vector<8x32xf32>
    %c0_1 = arith.constant 0 : index
    %c0_2 = arith.constant 0 : index
    %1 = vector.load %arg2[%c0_1, %c0_2] : memref<32x256xf32, #tpu.memory_space<vmem>>, vector<32x256xf32>
    %cst = arith.constant dense<0.000000e+00> : vector<8x256xf32>
    %2 = tpu.matmul %0, %1, %cst {dimension_numbers = #tpu.dot_dimension_numbers<[1], [0], [0], [1], [0, 0, 1, 1], [], []>} : vector<8x32xf32>, vector<32x256xf32>, vector<8x256xf32> -> vector<8x256xf32>
    %c0_3 = arith.constant 0 : index
    %c0_4 = arith.constant 0 : index
    %3 = vector.load %arg3[%c0_3, %c0_4] : memref<1x256xf32, #tpu.memory_space<vmem>>, vector<1x256xf32>
    %4 = vector.broadcast %3 : vector<1x256xf32> to vector<8x256xf32>
    %5 = arith.addf %2, %4 : vector<8x256xf32>
    %cst_5 = arith.constant 0.000000e+00 : f32
    %6 = vector.broadcast %cst_5 : f32 to vector<8x256xf32>
    %7 = arith.maximumf %5, %6 : vector<8x256xf32>
    %8 = arith.truncf %7 : vector<8x256xf32> to vector<8x256xbf16>
    %c0_6 = arith.constant 0 : index
    %c0_7 = arith.constant 0 : index
    %9 = vector.load %arg4[%c0_6, %c0_7] : memref<256x128xbf16, #tpu.memory_space<vmem>>, vector<256x128xbf16>
    %cst_8 = arith.constant dense<0.000000e+00> : vector<8x128xf32>
    %10 = tpu.matmul %8, %9, %cst_8 {dimension_numbers = #tpu.dot_dimension_numbers<[1], [0], [0], [1], [0, 0, 1, 1], [], []>} : vector<8x256xbf16>, vector<256x128xbf16>, vector<8x128xf32> -> vector<8x128xf32>
    %c0_9 = arith.constant 0 : index
    %c0_10 = arith.constant 0 : index
    %11 = vector.load %arg5[%c0_9, %c0_10] : memref<1x128xf32, #tpu.memory_space<vmem>>, vector<1x128xf32>
    %12 = vector.broadcast %11 : vector<1x128xf32> to vector<8x128xf32>
    %13 = arith.addf %10, %12 : vector<8x128xf32>
    %cst_11 = arith.constant 0.000000e+00 : f32
    %14 = vector.broadcast %cst_11 : f32 to vector<8x128xf32>
    %15 = arith.maximumf %13, %14 : vector<8x128xf32>
    %16 = arith.truncf %15 : vector<8x128xf32> to vector<8x128xbf16>
    %c0_12 = arith.constant 0 : index
    %c0_13 = arith.constant 0 : index
    %17 = vector.load %arg6[%c0_12, %c0_13] : memref<128x128xbf16, #tpu.memory_space<vmem>>, vector<128x128xbf16>
    %cst_14 = arith.constant dense<0.000000e+00> : vector<8x128xf32>
    %18 = tpu.matmul %16, %17, %cst_14 {dimension_numbers = #tpu.dot_dimension_numbers<[1], [0], [0], [1], [0, 0, 1, 1], [], []>} : vector<8x128xbf16>, vector<128x128xbf16>, vector<8x128xf32> -> vector<8x128xf32>
    %c0_15 = arith.constant 0 : index
    %c0_16 = arith.constant 0 : index
    %19 = vector.load %arg7[%c0_15, %c0_16] : memref<1x128xf32, #tpu.memory_space<vmem>>, vector<1x128xf32>
    %20 = vector.broadcast %19 : vector<1x128xf32> to vector<8x128xf32>
    %21 = arith.addf %18, %20 : vector<8x128xf32>
    %cst_17 = arith.constant 0.000000e+00 : f32
    %22 = vector.broadcast %cst_17 : f32 to vector<8x128xf32>
    %23 = arith.maximumf %21, %22 : vector<8x128xf32>
    %24 = arith.truncf %23 : vector<8x128xf32> to vector<8x128xbf16>
    %c0_18 = arith.constant 0 : index
    %c0_19 = arith.constant 0 : index
    %25 = vector.load %arg8[%c0_18, %c0_19] : memref<128x128xbf16, #tpu.memory_space<vmem>>, vector<128x128xbf16>
    %cst_20 = arith.constant dense<0.000000e+00> : vector<8x128xf32>
    %26 = tpu.matmul %24, %25, %cst_20 {dimension_numbers = #tpu.dot_dimension_numbers<[1], [0], [0], [1], [0, 0, 1, 1], [], []>} : vector<8x128xbf16>, vector<128x128xbf16>, vector<8x128xf32> -> vector<8x128xf32>
    %c0_21 = arith.constant 0 : index
    %c0_22 = arith.constant 0 : index
    %27 = vector.load %arg9[%c0_21, %c0_22] : memref<1x128xf32, #tpu.memory_space<vmem>>, vector<1x128xf32>
    %28 = vector.broadcast %27 : vector<1x128xf32> to vector<8x128xf32>
    %29 = arith.addf %26, %28 : vector<8x128xf32>
    %cst_23 = arith.constant 0.000000e+00 : f32
    %30 = vector.broadcast %cst_23 : f32 to vector<8x128xf32>
    %31 = arith.maximumf %29, %30 : vector<8x128xf32>
    %32 = arith.truncf %31 : vector<8x128xf32> to vector<8x128xbf16>
    %c0_24 = arith.constant 0 : index
    %c0_25 = arith.constant 0 : index
    %33 = vector.load %arg10[%c0_24, %c0_25] : memref<128x128xbf16, #tpu.memory_space<vmem>>, vector<128x128xbf16>
    %cst_26 = arith.constant dense<0.000000e+00> : vector<8x128xf32>
    %34 = tpu.matmul %32, %33, %cst_26 {dimension_numbers = #tpu.dot_dimension_numbers<[1], [0], [0], [1], [0, 0, 1, 1], [], []>} : vector<8x128xbf16>, vector<128x128xbf16>, vector<8x128xf32> -> vector<8x128xf32>
    %c0_27 = arith.constant 0 : index
    %c0_28 = arith.constant 0 : index
    %35 = vector.load %arg11[%c0_27, %c0_28] : memref<1x128xf32, #tpu.memory_space<vmem>>, vector<1x128xf32>
    %36 = vector.broadcast %35 : vector<1x128xf32> to vector<8x128xf32>
    %37 = arith.addf %34, %36 : vector<8x128xf32>
    %38 = arith.truncf %37 : vector<8x128xf32> to vector<8x128xbf16>
    %c0_29 = arith.constant 0 : index
    %c0_30 = arith.constant 0 : index
    %39 = vector.load %arg12[%c0_29, %c0_30] : memref<8x128xbf16, #tpu.memory_space<vmem>>, vector<8x128xbf16>
    tpu.vector_store %arg12[%c0_29, %c0_30], %38 {strides = array<i32>} : memref<8x128xbf16, #tpu.memory_space<vmem>>, vector<8x128xbf16>,
    return
  }
  func.func @transform_0(%arg0: i32) -> (i32, i32) {
    %c0_i32 = arith.constant 0 : i32
    %c0_i32_0 = arith.constant 0 : i32
    return %arg0, %c0_i32 : i32, i32
  }
  func.func @transform_1(%arg0: i32) -> (i32, i32) {
    %c0_i32 = arith.constant 0 : i32
    %c0_i32_0 = arith.constant 0 : i32
    %c0_i32_1 = arith.constant 0 : i32
    return %c0_i32, %c0_i32_0 : i32, i32
  }
  func.func @transform_2(%arg0: i32) -> (i32, i32) {
    %c0_i32 = arith.constant 0 : i32
    %c0_i32_0 = arith.constant 0 : i32
    %c0_i32_1 = arith.constant 0 : i32
    return %c0_i32, %c0_i32_0 : i32, i32
  }
  func.func @transform_3(%arg0: i32) -> (i32, i32) {
    %c0_i32 = arith.constant 0 : i32
    %c0_i32_0 = arith.constant 0 : i32
    %c0_i32_1 = arith.constant 0 : i32
    return %c0_i32, %c0_i32_0 : i32, i32
  }
  func.func @transform_4(%arg0: i32) -> (i32, i32) {
    %c0_i32 = arith.constant 0 : i32
    %c0_i32_0 = arith.constant 0 : i32
    %c0_i32_1 = arith.constant 0 : i32
    return %c0_i32, %c0_i32_0 : i32, i32
  }
  func.func @transform_5(%arg0: i32) -> (i32, i32) {
    %c0_i32 = arith.constant 0 : i32
    %c0_i32_0 = arith.constant 0 : i32
    %c0_i32_1 = arith.constant 0 : i32
    return %c0_i32, %c0_i32_0 : i32, i32
  }
  func.func @transform_6(%arg0: i32) -> (i32, i32) {
    %c0_i32 = arith.constant 0 : i32
    %c0_i32_0 = arith.constant 0 : i32
    %c0_i32_1 = arith.constant 0 : i32
    return %c0_i32, %c0_i32_0 : i32, i32
  }
  func.func @transform_7(%arg0: i32) -> (i32, i32) {
    %c0_i32 = arith.constant 0 : i32
    %c0_i32_0 = arith.constant 0 : i32
    %c0_i32_1 = arith.constant 0 : i32
    return %c0_i32, %c0_i32_0 : i32, i32
  }
  func.func @transform_8(%arg0: i32) -> (i32, i32) {
    %c0_i32 = arith.constant 0 : i32
    %c0_i32_0 = arith.constant 0 : i32
    %c0_i32_1 = arith.constant 0 : i32
    return %c0_i32, %c0_i32_0 : i32, i32
  }
  func.func @transform_9(%arg0: i32) -> (i32, i32) {
    %c0_i32 = arith.constant 0 : i32
    %c0_i32_0 = arith.constant 0 : i32
    %c0_i32_1 = arith.constant 0 : i32
    return %c0_i32, %c0_i32_0 : i32, i32
  }
  func.func @transform_10(%arg0: i32) -> (i32, i32) {
    %c0_i32 = arith.constant 0 : i32
    %c0_i32_0 = arith.constant 0 : i32
    %c0_i32_1 = arith.constant 0 : i32
    return %c0_i32, %c0_i32_0 : i32, i32
  }
  func.func @transform_11(%arg0: i32) -> (i32, i32) {
    %c0_i32 = arith.constant 0 : i32
    %c0_i32_0 = arith.constant 0 : i32
    return %arg0, %c0_i32 : i32, i32
  }
}

</mosaic_0001>

<llo_original>
// kernel: tpu_custom_call.1
$region0: #{tpu_custom_call.1}
  #allocation0 [shape = 'u32[]', space=smem, size = 0x4, offset = 0x4, fixed_abs, tag = 'smem constant byte address 0x4 - core index']
  #allocation1 [shape = 'u32[144,128]{1,0:T(1,128)}', space=vmem, size = 0x12000, scoped, tag = 'internal scratch']
  %s0 = inlined_call_operand.hbm [shape: f32[8,32], index: 0, kind: input, shape index: {}]
  %s1 = inlined_call_operand.hbm [shape: f32[32,256], index: 1, kind: input, shape index: {}]
  %s2 = inlined_call_operand.vmem [shape: f32[1,256], index: 2, kind: input, shape index: {}]
  %s3 = inlined_call_operand.hbm [shape: bf16[256,128], index: 3, kind: input, shape index: {}]
  %s4 = inlined_call_operand.vmem [shape: f32[1,128], index: 4, kind: input, shape index: {}]
  %s5 = inlined_call_operand.hbm [shape: bf16[128,128], index: 5, kind: input, shape index: {}]
  %s6 = inlined_call_operand.vmem [shape: f32[1,128], index: 6, kind: input, shape index: {}]
  %s7 = inlined_call_operand.hbm [shape: bf16[128,128], index: 7, kind: input, shape index: {}]
  %s8 = inlined_call_operand.vmem [shape: f32[1,128], index: 8, kind: input, shape index: {}]
  %s9 = inlined_call_operand.hbm [shape: bf16[128,128], index: 9, kind: input, shape index: {}]
  %s10 = inlined_call_operand.vmem [shape: f32[1,128], index: 10, kind: input, shape index: {}]
  %s11 = inlined_call_operand.hbm [shape: bf16[8,128], index: 11, kind: output, shape index: {}]
  %s12 = sld [smem:[#allocation0]]
  $region78: #{tpu_custom_call.1} parent=0
    _
  %s14 = ssub.s32 1, %s12
  %s15 = scalar_select 0, %s14, %s12
  $region1: #{tpu_custom_call.1} parent=0
    #allocation2 [shape = 'u8[4096]{0}', space=vmem, size = 0x1000, scoped, tag = 'input window, operand 0, single buffered']
    #allocation3 [shape = 's32[1]{0}', space=sflag, size = 0x4, scoped, tag = 'scoped memory for tpu_custom_call.1']
    #allocation4 [shape = 's32[1]{0}', space=sflag, size = 0x4, scoped, tag = 'scoped memory for tpu_custom_call.1']
    #allocation5 [shape = 'u8[32768]{0}', space=vmem, size = 0x8000, scoped, tag = 'input window, operand 1, single buffered']
    #allocation6 [shape = 's32[1]{0}', space=sflag, size = 0x4, scoped, tag = 'scoped memory for tpu_custom_call.1']
    #allocation7 [shape = 'u8[65536]{0}', space=vmem, size = 0x10000, scoped, tag = 'input window, operand 3, single buffered']
    #allocation8 [shape = 'u8[32768]{0}', space=vmem, size = 0x8000, scoped, tag = 'input window, operand 5, single buffered']
    #allocation9 [shape = 's32[1]{0}', space=sflag, size = 0x4, scoped, tag = 'scoped memory for tpu_custom_call.1']
    #allocation10 [shape = 'u8[32768]{0}', space=vmem, size = 0x8000, scoped, tag = 'input window, operand 7, single buffered']
    #allocation11 [shape = 'u8[32768]{0}', space=vmem, size = 0x8000, scoped, tag = 'input window, operand 9, single buffered']
    #allocation12 [shape = 's32[1]{0}', space=sflag, size = 0x4, scoped, tag = 'scoped memory for tpu_custom_call.1']
    #allocation13 [shape = 'u8[2048]{0}', space=vmem, size = 0x800, scoped, tag = 'output window, operand 0, single buffered']
    %16 = vsyncpa [#allocation3], 0
    %17 = vsyncpa [#allocation6], 0
    %18 = vsyncpa [#allocation9], 0
    %19 = vsyncpa [#allocation12], 0
    %20 = vsyncpa [#allocation4], 0
    // Predicated region
    $region2: #{tpu_custom_call.1} parent=1 // pred_check
      _
    $region3: #{tpu_custom_call.1} parent=1 // pred_check_branch
      %22 = sbr.rel (0) target = $region5
    $region4: #{tpu_custom_call.1} parent=1 // pred_region
      %s24 = ssub.s32 128, 128
      %25 = vsyncadd [#allocation3], %s24
      %s27 = sshll.u32 [#allocation2], 4
      %s28 = int_to_ptr.vmem [resolvable:$true] %s27
      %30 = dma.hbm_to_vmem [thread:$0]  %s0, 128, %s28, [#allocation3]
    $region5: #{tpu_custom_call.1} parent=1 // pred_fallthru
      _
    // Predicated region
    $region6: #{tpu_custom_call.1} parent=1 // pred_check
      _
    $region7: #{tpu_custom_call.1} parent=1 // pred_check_branch
      %32 = sbr.rel (0) target = $region9
    $region8: #{tpu_custom_call.1} parent=1 // pred_region
      %s34 = ssub.s32 1024, 1024
      %35 = vsyncadd [#allocation6], %s34
      %s36 = sshll.u32 [#allocation5], 4
      %s37 = int_to_ptr.vmem [resolvable:$true] %s36
      %42 = dma.hbm_to_vmem [thread:$0]  %s1, 1024, %s37, [#allocation6], 256, 256, 16
    $region9: #{tpu_custom_call.1} parent=1 // pred_fallthru
      _
    // Predicated region
    $region10: #{tpu_custom_call.1} parent=1 // pred_check
      _
    $region11: #{tpu_custom_call.1} parent=1 // pred_check_branch
      %44 = sbr.rel (0) target = $region13
    $region12: #{tpu_custom_call.1} parent=1 // pred_region
      _
    $region13: #{tpu_custom_call.1} parent=1 // pred_fallthru
      _
    // Predicated region
    $region14: #{tpu_custom_call.1} parent=1 // pred_check
      _
    $region15: #{tpu_custom_call.1} parent=1 // pred_check_branch
      %46 = sbr.rel (0) target = $region17
    $region16: #{tpu_custom_call.1} parent=1 // pred_region
      %s48 = ssub.s32 2048, 2048
      %49 = vsyncadd [#allocation6], %s48
      %s50 = sshll.u32 [#allocation7], 4
      %s51 = int_to_ptr.vmem [resolvable:$true] %s50
      %56 = dma.hbm_to_vmem [thread:$0]  %s3, 2048, %s51, [#allocation6], 64, 64, 4
    $region17: #{tpu_custom_call.1} parent=1 // pred_fallthru
      _
    // Predicated region
    $region18: #{tpu_custom_call.1} parent=1 // pred_check
      _
    $region19: #{tpu_custom_call.1} parent=1 // pred_check_branch
      %58 = sbr.rel (0) target = $region21
    $region20: #{tpu_custom_call.1} parent=1 // pred_region
      _
    $region21: #{tpu_custom_call.1} parent=1 // pred_fallthru
      _
    // Predicated region
    $region22: #{tpu_custom_call.1} parent=1 // pred_check
      _
    $region23: #{tpu_custom_call.1} parent=1 // pred_check_branch
      %60 = sbr.rel (0) target = $region25
    $region24: #{tpu_custom_call.1} parent=1 // pred_region
      %s62 = ssub.s32 1024, 1024
      %63 = vsyncadd [#allocation9], %s62
      %s64 = sshll.u32 [#allocation8], 4
      %s65 = int_to_ptr.vmem [resolvable:$true] %s64
      %70 = dma.hbm_to_vmem [thread:$0]  %s5, 1024, %s65, [#allocation9], 64, 64, 4
    $region25: #{tpu_custom_call.1} parent=1 // pred_fallthru
      _
    // Predicated region
    $region26: #{tpu_custom_call.1} parent=1 // pred_check
      _
    $region27: #{tpu_custom_call.1} parent=1 // pred_check_branch
      %72 = sbr.rel (0) target = $region29
    $region28: #{tpu_custom_call.1} parent=1 // pred_region
      _
    $region29: #{tpu_custom_call.1} parent=1 // pred_fallthru
      _
    // Predicated region
    $region30: #{tpu_custom_call.1} parent=1 // pred_check
      _
    $region31: #{tpu_custom_call.1} parent=1 // pred_check_branch
      %74 = sbr.rel (0) target = $region33
    $region32: #{tpu_custom_call.1} parent=1 // pred_region
      %s76 = ssub.s32 1024, 1024
      %77 = vsyncadd [#allocation9], %s76
      %s78 = sshll.u32 [#allocation10], 4
      %s79 = int_to_ptr.vmem [resolvable:$true] %s78
      %84 = dma.hbm_to_vmem [thread:$0]  %s7, 1024, %s79, [#allocation9], 64, 64, 4
    $region33: #{tpu_custom_call.1} parent=1 // pred_fallthru
      _
    // Predicated region
    $region34: #{tpu_custom_call.1} parent=1 // pred_check
      _
    $region35: #{tpu_custom_call.1} parent=1 // pred_check_branch
      %86 = sbr.rel (0) target = $region37
    $region36: #{tpu_custom_call.1} parent=1 // pred_region
      _
    $region37: #{tpu_custom_call.1} parent=1 // pred_fallthru
      _
    // Predicated region
    $region38: #{tpu_custom_call.1} parent=1 // pred_check
      _
    $region39: #{tpu_custom_call.1} parent=1 // pred_check_branch
      %88 = sbr.rel (0) target = $region41
    $region40: #{tpu_custom_call.1} parent=1 // pred_region
      %s90 = ssub.s32 1024, 1024
      %91 = vsyncadd [#allocation12], %s90
      %s92 = sshll.u32 [#allocation11], 4
      %s93 = int_to_ptr.vmem [resolvable:$true] %s92
      %98 = dma.hbm_to_vmem [thread:$0]  %s9, 1024, %s93, [#allocation12], 64, 64, 4
    $region41: #{tpu_custom_call.1} parent=1 // pred_fallthru
      _
    // Predicated region
    $region42: #{tpu_custom_call.1} parent=1 // pred_check
      _
    $region43: #{tpu_custom_call.1} parent=1 // pred_check_branch
      %100 = sbr.rel (0) target = $region45
    $region44: #{tpu_custom_call.1} parent=1 // pred_region
      _
    $region45: #{tpu_custom_call.1} parent=1 // pred_fallthru
      _
    // Predicated region
    $region46: #{tpu_custom_call.1} parent=1 // pred_check
      _
    $region47: #{tpu_custom_call.1} parent=1 // pred_check_branch
      %102 = sbr.rel (0) target = $region49
    $region48: #{tpu_custom_call.1} parent=1 // pred_region
      %103 = dma.done [#allocation3], 128
    $region49: #{tpu_custom_call.1} parent=1 // pred_fallthru
      _
    // Predicated region
    $region50: #{tpu_custom_call.1} parent=1 // pred_check
      _
    $region51: #{tpu_custom_call.1} parent=1 // pred_check_branch
      %105 = sbr.rel (0) target = $region53
    $region52: #{tpu_custom_call.1} parent=1 // pred_region
      %106 = dma.done [#allocation6], 1024
    $region53: #{tpu_custom_call.1} parent=1 // pred_fallthru
      _
    // Predicated region
    $region54: #{tpu_custom_call.1} parent=1 // pred_check
      _
    $region55: #{tpu_custom_call.1} parent=1 // pred_check_branch
      %108 = sbr.rel (0) target = $region57
    $region56: #{tpu_custom_call.1} parent=1 // pred_region
      %109 = dma.done [#allocation6], 2048
    $region57: #{tpu_custom_call.1} parent=1 // pred_fallthru
      _
    // Predicated region
    $region58: #{tpu_custom_call.1} parent=1 // pred_check
      _
    $region59: #{tpu_custom_call.1} parent=1 // pred_check_branch
      %111 = sbr.rel (0) target = $region61
    $region60: #{tpu_custom_call.1} parent=1 // pred_region
      %112 = dma.done [#allocation9], 1024
    $region61: #{tpu_custom_call.1} parent=1 // pred_fallthru
      _
    // Predicated region
    $region62: #{tpu_custom_call.1} parent=1 // pred_check
      _
    $region63: #{tpu_custom_call.1} parent=1 // pred_check_branch
      %114 = sbr.rel (0) target = $region65
    $region64: #{tpu_custom_call.1} parent=1 // pred_region
      %115 = dma.done [#allocation9], 1024
    $region65: #{tpu_custom_call.1} parent=1 // pred_fallthru
      _
    // Predicated region
    $region66: #{tpu_custom_call.1} parent=1 // pred_check
      _
    $region67: #{tpu_custom_call.1} parent=1 // pred_check_branch
      %117 = sbr.rel (0) target = $region69
    $region68: #{tpu_custom_call.1} parent=1 // pred_region
      %118 = dma.done [#allocation12], 1024
    $region69: #{tpu_custom_call.1} parent=1 // pred_fallthru
      _
    %v120 = vld [vmem:[#allocation2] sm:$0xff]
    %v121 = vld [vmem:[#allocation5] sm:$0xff]
    %v122 = vld [vmem:[#allocation5 + $0x8] sm:$0xff]
    %v123 = vld [vmem:[#allocation5 + $0x10] sm:$0xff]
    %v124 = vld [vmem:[#allocation5 + $0x18] sm:$0xff]
    %v125 = vld [vmem:[#allocation5 + $0x20] sm:$0xff]
    %v126 = vld [vmem:[#allocation5 + $0x28] sm:$0xff]
    %v127 = vld [vmem:[#allocation5 + $0x30] sm:$0xff]
    %v128 = vld [vmem:[#allocation5 + $0x38] sm:$0xff]
    %v129 = vld [vmem:[%s2] sm:$0x3]
    %v131 = vlaneseq
    %v132 = vshrl.u32 %v131, 7
    %v133 = vsub.s32 0, %v132
    %v134 = vrot.slane %v129, %v133
    %v135 = vlaneseq
    %v136 = vshrl.u32 %v135, 7
    %v137 = vsub.s32 1, %v136
    %v138 = vrot.slane %v129, %v137
    %vm141 = vcmask 261120
    %v143 = vsel %vm141, %v120, 0
    %145 = vmatprep.subr.mxu0 0.0
    %146 = vmatpush1.msra.mxu0 0.0
    %147 = vmatprep.subr.mxu0 0.0
    %148 = vmatpush1.msra.mxu0 0.0
    %149 = vmatprep.subr.mxu0 0.0
    %150 = vmatpush1.msra.mxu0 0.0
    %151 = vmatprep.subr.mxu0 0.0
    %152 = vmatpush1.msra.mxu0 0.0
    %153 = vmatprep.subr.mxu0 0.0
    %154 = vmatpush1.msra.mxu0 0.0
    %155 = vmatprep.subr.mxu0 0.0
    %156 = vmatpush1.msra.mxu0 0.0
    %157 = vmatprep.subr.mxu0 0.0
    %158 = vmatpush1.msra.mxu0 0.0
    %159 = vmatprep.subr.mxu0 0.0
    %160 = vmatpush1.msra.mxu0 0.0
    %161 = vmatprep.subr.mxu0 0.0
    %162 = vmatpush1.msra.mxu0 0.0
    %163 = vmatprep.subr.mxu0 0.0
    %164 = vmatpush1.msra.mxu0 0.0
    %165 = vmatprep.subr.mxu0 0.0
    %166 = vmatpush1.msra.mxu0 0.0
    %167 = vmatprep.subr.mxu0 0.0
    %168 = vmatpush1.msra.mxu0 0.0
    %169 = vmatprep.subr.mxu0 %v128
    %170 = vmatpush1.msra.mxu0 %v127
    %171 = vmatprep.subr.mxu0 %v126
    %172 = vmatpush1.msra.mxu0 %v125
    %173 = vmatprep.subr.mxu0 %v124
    %174 = vmatpush1.msra.mxu0 %v123
    %175 = vmatprep.subr.mxu0 %v122
    %176 = vmatpush1.msra.mxu0 %v121
    %177 = vmatprep.subr.mxu0 0.0
    %178 = vmatpush2.msra.mxu0 0.0
    %179 = vmatprep.subr.mxu0 0.0
    %180 = vmatpush2.msra.mxu0 0.0
    %181 = vmatprep.subr.mxu0 0.0
    %182 = vmatpush2.msra.mxu0 0.0
    %183 = vmatprep.subr.mxu0 0.0
    %184 = vmatpush2.msra.mxu0 0.0
    %185 = vmatprep.subr.mxu0 0.0
    %186 = vmatpush2.msra.mxu0 0.0
    %187 = vmatprep.subr.mxu0 0.0
    %188 = vmatpush2.msra.mxu0 0.0
    %189 = vmatprep.subr.mxu0 0.0
    %190 = vmatpush2.msra.mxu0 0.0
    %191 = vmatprep.subr.mxu0 0.0
    %192 = vmatpush2.msra.mxu0 0.0
    %193 = vmatprep.subr.mxu0 0.0
    %194 = vmatpush2.msra.mxu0 0.0
    %195 = vmatprep.subr.mxu0 0.0
    %196 = vmatpush2.msra.mxu0 0.0
    %197 = vmatprep.subr.mxu0 0.0
    %198 = vmatpush2.msra.mxu0 0.0
    %199 = vmatprep.subr.mxu0 0.0
    %200 = vmatpush2.msra.mxu0 0.0
    %201 = vmatprep.subr.mxu0 0.0
    %202 = vmatpush2.msra.mxu0 0.0
    %203 = vmatprep.subr.mxu0 0.0
    %204 = vmatpush2.msra.mxu0 0.0
    %205 = vmatprep.subr.mxu0 0.0
    %206 = vmatpush2.msra.mxu0 0.0
    %207 = vmatprep.subr.mxu0 0.0
    %208 = vmatpush2.msra.mxu0 0.0
    %209 = vmatprep.mubr.f32.mxu0 0.0
    %210 = vmatmul.mubr.f32.gmra.mxu0 %v143
    %v211 = vpop.f32.mrf.mxu0
    %v212 = vadd.f32 %v134, %v211
    %v213 = vpop.f32.mrf.mxu0
    %v214 = vadd.f32 %v138, %v213
    %215 = vdwg.mxu0
    %v216 = vmax.f32 %v212, 0.0
    %v217 = vmax.f32 %v214, 0.0
    %v218 = vpack.c.bf16 %v216, %v216
    %v219 = vpack.c.bf16 %v217, %v217
    %v220 = vld [vmem:[#allocation7] sm:$0xf]
    %v221 = vld [vmem:[#allocation7 + $0x4] sm:$0xf]
    %v222 = vld [vmem:[#allocation7 + $0x8] sm:$0xf]
    %v223 = vld [vmem:[#allocation7 + $0xc] sm:$0xf]
    %v224 = vld [vmem:[#allocation7 + $0x10] sm:$0xf]
    %v225 = vld [vmem:[#allocation7 + $0x14] sm:$0xf]
    %v226 = vld [vmem:[#allocation7 + $0x18] sm:$0xf]
    %v227 = vld [vmem:[#allocation7 + $0x1c] sm:$0xf]
    %v228 = vld [vmem:[#allocation7 + $0x20] sm:$0xf]
    %v229 = vld [vmem:[#allocation7 + $0x24] sm:$0xf]
    %v230 = vld [vmem:[#allocation7 + $0x28] sm:$0xf]
    %v231 = vld [vmem:[#allocation7 + $0x2c] sm:$0xf]
    %v232 = vld [vmem:[#allocation7 + $0x30] sm:$0xf]
    %v233 = vld [vmem:[#allocation7 + $0x34] sm:$0xf]
    %v234 = vld [vmem:[#allocation7 + $0x38] sm:$0xf]
    %v235 = vld [vmem:[#allocation7 + $0x3c] sm:$0xf]
    %v236 = vld [vmem:[#allocation7 + $0x40] sm:$0xf]
    %v237 = vld [vmem:[#allocation7 + $0x44] sm:$0xf]
    %v238 = vld [vmem:[#allocation7 + $0x48] sm:$0xf]
    %v239 = vld [vmem:[#allocation7 + $0x4c] sm:$0xf]
    %v240 = vld [vmem:[#allocation7 + $0x50] sm:$0xf]
    %v241 = vld [vmem:[#allocation7 + $0x54] sm:$0xf]
    %v242 = vld [vmem:[#allocation7 + $0x58] sm:$0xf]
    %v243 = vld [vmem:[#allocation7 + $0x5c] sm:$0xf]
    %v244 = vld [vmem:[#allocation7 + $0x60] sm:$0xf]
    %v245 = vld [vmem:[#allocation7 + $0x64] sm:$0xf]
    %v246 = vld [vmem:[#allocation7 + $0x68] sm:$0xf]
    %v247 = vld [vmem:[#allocation7 + $0x6c] sm:$0xf]
    %v248 = vld [vmem:[#allocation7 + $0x70] sm:$0xf]
    %v249 = vld [vmem:[#allocation7 + $0x74] sm:$0xf]
    %v250 = vld [vmem:[#allocation7 + $0x78] sm:$0xf]
    %v251 = vld [vmem:[#allocation7 + $0x7c] sm:$0xf]
    %v252 = vld [vmem:[%s4] sm:$0x1]
    %v254 = vlaneseq
    %v255 = vshrl.u32 %v254, 7
    %v256 = vsub.s32 0, %v255
    %v257 = vrot.slane %v252, %v256
    %v291 = vunpack.c.l.b16 %v220
    %v292 = vunpack.c.l.b16 %v221
    %v293 = vunpack.c.l.b16 %v222
    %v294 = vunpack.c.l.b16 %v223
    %v295 = vunpack.c.l.b16 %v224
    %v296 = vunpack.c.l.b16 %v225
    %v297 = vunpack.c.l.b16 %v226
    %v298 = vunpack.c.l.b16 %v227
    %v299 = vunpack.c.l.b16 %v228
    %v300 = vunpack.c.l.b16 %v229
    %v301 = vunpack.c.l.b16 %v230
    %v302 = vunpack.c.l.b16 %v231
    %v303 = vunpack.c.l.b16 %v232
    %v304 = vunpack.c.l.b16 %v233
    %v305 = vunpack.c.l.b16 %v234
    %v306 = vunpack.c.l.b16 %v235
    %v307 = vunpack.c.l.b16 %v236
    %v308 = vunpack.c.l.b16 %v237
    %v309 = vunpack.c.l.b16 %v238
    %v310 = vunpack.c.l.b16 %v239
    %v311 = vunpack.c.l.b16 %v240
    %v312 = vunpack.c.l.b16 %v241
    %v313 = vunpack.c.l.b16 %v242
    %v314 = vunpack.c.l.b16 %v243
    %v315 = vunpack.c.l.b16 %v244
    %v316 = vunpack.c.l.b16 %v245
    %v317 = vunpack.c.l.b16 %v246
    %v318 = vunpack.c.l.b16 %v247
    %v319 = vunpack.c.l.b16 %v248
    %v320 = vunpack.c.l.b16 %v249
    %v321 = vunpack.c.l.b16 %v250
    %v322 = vunpack.c.l.b16 %v251
    %v323 = vpack.c.b16 %v292, %v291
    %v324 = vpack.c.b16 %v294, %v293
    %v325 = vpack.c.b16 %v296, %v295
    %v326 = vpack.c.b16 %v298, %v297
    %v327 = vpack.c.b16 %v300, %v299
    %v328 = vpack.c.b16 %v302, %v301
    %v329 = vpack.c.b16 %v304, %v303
    %v330 = vpack.c.b16 %v306, %v305
    %v331 = vpack.c.b16 %v308, %v307
    %v332 = vpack.c.b16 %v310, %v309
    %v333 = vpack.c.b16 %v312, %v311
    %v334 = vpack.c.b16 %v314, %v313
    %v335 = vpack.c.b16 %v316, %v315
    %v336 = vpack.c.b16 %v318, %v317
    %v337 = vpack.c.b16 %v320, %v319
    %v338 = vpack.c.b16 %v322, %v321
    %355 = vmatprep.subr.bf16.mxu0 0
    %356 = vmatpush1.bf16.msra.mxu0 %v330
    %357 = vmatprep.subr.bf16.mxu0 0
    %358 = vmatpush1.bf16.msra.mxu0 %v329
    %359 = vmatprep.subr.bf16.mxu0 0
    %360 = vmatpush1.bf16.msra.mxu0 %v328
    %361 = vmatprep.subr.bf16.mxu0 0
    %362 = vmatpush1.bf16.msra.mxu0 %v327
    %363 = vmatprep.subr.bf16.mxu0 0
    %364 = vmatpush1.bf16.msra.mxu0 %v326
    %365 = vmatprep.subr.bf16.mxu0 0
    %366 = vmatpush1.bf16.msra.mxu0 %v325
    %367 = vmatprep.subr.bf16.mxu0 0
    %368 = vmatpush1.bf16.msra.mxu0 %v324
    %369 = vmatprep.subr.bf16.mxu0 0
    %370 = vmatpush1.bf16.msra.mxu0 %v323
    %371 = vmatprep.subr.bf16.mxu0 0
    %372 = vmatpush2.bf16.msra.mxu0 %v338
    %373 = vmatprep.subr.bf16.mxu0 0
    %374 = vmatpush2.bf16.msra.mxu0 %v337
    %375 = vmatprep.subr.bf16.mxu0 0
    %376 = vmatpush2.bf16.msra.mxu0 %v336
    %377 = vmatprep.subr.bf16.mxu0 0
    %378 = vmatpush2.bf16.msra.mxu0 %v335
    %379 = vmatprep.subr.bf16.mxu0 0
    %380 = vmatpush2.bf16.msra.mxu0 %v334
    %381 = vmatprep.subr.bf16.mxu0 0
    %382 = vmatpush2.bf16.msra.mxu0 %v333
    %383 = vmatprep.subr.bf16.mxu0 0
    %384 = vmatpush2.bf16.msra.mxu0 %v332
    %385 = vmatprep.subr.bf16.mxu0 0
    %386 = vmatpush2.bf16.msra.mxu0 %v331
    %387 = vmatprep.mubr.bf16.mxu0 %v219
    %388 = vmatmul.mubr.bf16.gmra.mxu0 %v218
    %v389 = vpop.f32.mrf.mxu0
    %v390 = vadd.f32 %v257, %v389
    %v391 = vpop.f32.mrf.mxu0
    %v392 = vpop.f32.mrf.mxu0
    %v393 = vpop.f32.mrf.mxu0
    %394 = vdwg.mxu0
    %v395 = vmax.f32 %v390, 0.0
    %v396 = vpack.c.bf16 %v395, %v395
    %v397 = vld [vmem:[#allocation8] sm:$0xf]
    %v398 = vld [vmem:[#allocation8 + $0x4] sm:$0xf]
    %v399 = vld [vmem:[#allocation8 + $0x8] sm:$0xf]
    %v400 = vld [vmem:[#allocation8 + $0xc] sm:$0xf]
    %v401 = vld [vmem:[#allocation8 + $0x10] sm:$0xf]
    %v402 = vld [vmem:[#allocation8 + $0x14] sm:$0xf]
    %v403 = vld [vmem:[#allocation8 + $0x18] sm:$0xf]
    %v404 = vld [vmem:[#allocation8 + $0x1c] sm:$0xf]
    %v405 = vld [vmem:[#allocation8 + $0x20] sm:$0xf]
    %v406 = vld [vmem:[#allocation8 + $0x24] sm:$0xf]
    %v407 = vld [vmem:[#allocation8 + $0x28] sm:$0xf]
    %v408 = vld [vmem:[#allocation8 + $0x2c] sm:$0xf]
    %v409 = vld [vmem:[#allocation8 + $0x30] sm:$0xf]
    %v410 = vld [vmem:[#allocation8 + $0x34] sm:$0xf]
    %v411 = vld [vmem:[#allocation8 + $0x38] sm:$0xf]
    %v412 = vld [vmem:[#allocation8 + $0x3c] sm:$0xf]
    %v413 = vld [vmem:[%s6] sm:$0x1]
    %v415 = vlaneseq
    %v416 = vshrl.u32 %v415, 7
    %v417 = vsub.s32 0, %v416
    %v418 = vrot.slane %v413, %v417
    %v436 = vunpack.c.l.b16 %v397
    %v437 = vunpack.c.l.b16 %v398
    %v438 = vunpack.c.l.b16 %v399
    %v439 = vunpack.c.l.b16 %v400
    %v440 = vunpack.c.l.b16 %v401
    %v441 = vunpack.c.l.b16 %v402
    %v442 = vunpack.c.l.b16 %v403
    %v443 = vunpack.c.l.b16 %v404
    %v444 = vunpack.c.l.b16 %v405
    %v445 = vunpack.c.l.b16 %v406
    %v446 = vunpack.c.l.b16 %v407
    %v447 = vunpack.c.l.b16 %v408
    %v448 = vunpack.c.l.b16 %v409
    %v449 = vunpack.c.l.b16 %v410
    %v450 = vunpack.c.l.b16 %v411
    %v451 = vunpack.c.l.b16 %v412
    %v452 = vpack.c.b16 %v437, %v436
    %v453 = vpack.c.b16 %v439, %v438
    %v454 = vpack.c.b16 %v441, %v440
    %v455 = vpack.c.b16 %v443, %v442
    %v456 = vpack.c.b16 %v445, %v444
    %v457 = vpack.c.b16 %v447, %v446
    %v458 = vpack.c.b16 %v449, %v448
    %v459 = vpack.c.b16 %v451, %v450
    %468 = vmatprep.subr.bf16.mxu0 0
    %469 = vmatpush1.bf16.msra.mxu0 %v459
    %470 = vmatprep.subr.bf16.mxu0 0
    %471 = vmatpush1.bf16.msra.mxu0 %v458
    %472 = vmatprep.subr.bf16.mxu0 0
    %473 = vmatpush1.bf16.msra.mxu0 %v457
    %474 = vmatprep.subr.bf16.mxu0 0
    %475 = vmatpush1.bf16.msra.mxu0 %v456
    %476 = vmatprep.subr.bf16.mxu0 0
    %477 = vmatpush1.bf16.msra.mxu0 %v455
    %478 = vmatprep.subr.bf16.mxu0 0
    %479 = vmatpush1.bf16.msra.mxu0 %v454
    %480 = vmatprep.subr.bf16.mxu0 0
    %481 = vmatpush1.bf16.msra.mxu0 %v453
    %482 = vmatprep.subr.bf16.mxu0 0
    %483 = vmatpush1.bf16.msra.mxu0 %v452
    %484 = vmatprep.subr.bf16.mxu0 0
    %485 = vmatpush2.bf16.msra.mxu0 0
    %486 = vmatprep.subr.bf16.mxu0 0
    %487 = vmatpush2.bf16.msra.mxu0 0
    %488 = vmatprep.subr.bf16.mxu0 0
    %489 = vmatpush2.bf16.msra.mxu0 0
    %490 = vmatprep.subr.bf16.mxu0 0
    %491 = vmatpush2.bf16.msra.mxu0 0
    %492 = vmatprep.subr.bf16.mxu0 0
    %493 = vmatpush2.bf16.msra.mxu0 0
    %494 = vmatprep.subr.bf16.mxu0 0
    %495 = vmatpush2.bf16.msra.mxu0 0
    %496 = vmatprep.subr.bf16.mxu0 0
    %497 = vmatpush2.bf16.msra.mxu0 0
    %498 = vmatprep.subr.bf16.mxu0 0
    %499 = vmatpush2.bf16.msra.mxu0 0
    %500 = vmatprep.mubr.bf16.mxu0 0
    %501 = vmatmul.mubr.bf16.gmra.mxu0 %v396
    %v502 = vpop.f32.mrf.mxu0
    %v503 = vadd.f32 %v418, %v502
    %v504 = vpop.f32.mrf.mxu0
    %v505 = vpop.f32.mrf.mxu0
    %v506 = vpop.f32.mrf.mxu0
    %507 = vdwg.mxu0
    %v508 = vmax.f32 %v503, 0.0
    %v509 = vpack.c.bf16 %v508, %v508
    %v510 = vld [vmem:[#allocation10] sm:$0xf]
    %v511 = vld [vmem:[#allocation10 + $0x4] sm:$0xf]
    %v512 = vld [vmem:[#allocation10 + $0x8] sm:$0xf]
    %v513 = vld [vmem:[#allocation10 + $0xc] sm:$0xf]
    %v514 = vld [vmem:[#allocation10 + $0x10] sm:$0xf]
    %v515 = vld [vmem:[#allocation10 + $0x14] sm:$0xf]
    %v516 = vld [vmem:[#allocation10 + $0x18] sm:$0xf]
    %v517 = vld [vmem:[#allocation10 + $0x1c] sm:$0xf]
    %v518 = vld [vmem:[#allocation10 + $0x20] sm:$0xf]
    %v519 = vld [vmem:[#allocation10 + $0x24] sm:$0xf]
    %v520 = vld [vmem:[#allocation10 + $0x28] sm:$0xf]
    %v521 = vld [vmem:[#allocation10 + $0x2c] sm:$0xf]
    %v522 = vld [vmem:[#allocation10 + $0x30] sm:$0xf]
    %v523 = vld [vmem:[#allocation10 + $0x34] sm:$0xf]
    %v524 = vld [vmem:[#allocation10 + $0x38] sm:$0xf]
    %v525 = vld [vmem:[#allocation10 + $0x3c] sm:$0xf]
    %v526 = vld [vmem:[%s8] sm:$0x1]
    %v528 = vlaneseq
    %v529 = vshrl.u32 %v528, 7
    %v530 = vsub.s32 0, %v529
    %v531 = vrot.slane %v526, %v530
    %v549 = vunpack.c.l.b16 %v510
    %v550 = vunpack.c.l.b16 %v511
    %v551 = vunpack.c.l.b16 %v512
    %v552 = vunpack.c.l.b16 %v513
    %v553 = vunpack.c.l.b16 %v514
    %v554 = vunpack.c.l.b16 %v515
    %v555 = vunpack.c.l.b16 %v516
    %v556 = vunpack.c.l.b16 %v517
    %v557 = vunpack.c.l.b16 %v518
    %v558 = vunpack.c.l.b16 %v519
    %v559 = vunpack.c.l.b16 %v520
    %v560 = vunpack.c.l.b16 %v521
    %v561 = vunpack.c.l.b16 %v522
    %v562 = vunpack.c.l.b16 %v523
    %v563 = vunpack.c.l.b16 %v524
    %v564 = vunpack.c.l.b16 %v525
    %v565 = vpack.c.b16 %v550, %v549
    %v566 = vpack.c.b16 %v552, %v551
    %v567 = vpack.c.b16 %v554, %v553
    %v568 = vpack.c.b16 %v556, %v555
    %v569 = vpack.c.b16 %v558, %v557
    %v570 = vpack.c.b16 %v560, %v559
    %v571 = vpack.c.b16 %v562, %v561
    %v572 = vpack.c.b16 %v564, %v563
    %581 = vmatprep.subr.bf16.mxu0 0
    %582 = vmatpush1.bf16.msra.mxu0 %v572
    %583 = vmatprep.subr.bf16.mxu0 0
    %584 = vmatpush1.bf16.msra.mxu0 %v571
    %585 = vmatprep.subr.bf16.mxu0 0
    %586 = vmatpush1.bf16.msra.mxu0 %v570
    %587 = vmatprep.subr.bf16.mxu0 0
    %588 = vmatpush1.bf16.msra.mxu0 %v569
    %589 = vmatprep.subr.bf16.mxu0 0
    %590 = vmatpush1.bf16.msra.mxu0 %v568
    %591 = vmatprep.subr.bf16.mxu0 0
    %592 = vmatpush1.bf16.msra.mxu0 %v567
    %593 = vmatprep.subr.bf16.mxu0 0
    %594 = vmatpush1.bf16.msra.mxu0 %v566
    %595 = vmatprep.subr.bf16.mxu0 0
    %596 = vmatpush1.bf16.msra.mxu0 %v565
    %597 = vmatprep.subr.bf16.mxu0 0
    %598 = vmatpush2.bf16.msra.mxu0 0
    %599 = vmatprep.subr.bf16.mxu0 0
    %600 = vmatpush2.bf16.msra.mxu0 0
    %601 = vmatprep.subr.bf16.mxu0 0
    %602 = vmatpush2.bf16.msra.mxu0 0
    %603 = vmatprep.subr.bf16.mxu0 0
    %604 = vmatpush2.bf16.msra.mxu0 0
    %605 = vmatprep.subr.bf16.mxu0 0
    %606 = vmatpush2.bf16.msra.mxu0 0
    %607 = vmatprep.subr.bf16.mxu0 0
    %608 = vmatpush2.bf16.msra.mxu0 0
    %609 = vmatprep.subr.bf16.mxu0 0
    %610 = vmatpush2.bf16.msra.mxu0 0
    %611 = vmatprep.subr.bf16.mxu0 0
    %612 = vmatpush2.bf16.msra.mxu0 0
    %613 = vmatprep.mubr.bf16.mxu0 0
    %614 = vmatmul.mubr.bf16.gmra.mxu0 %v509
    %v615 = vpop.f32.mrf.mxu0
    %v616 = vadd.f32 %v531, %v615
    %v617 = vpop.f32.mrf.mxu0
    %v618 = vpop.f32.mrf.mxu0
    %v619 = vpop.f32.mrf.mxu0
    %620 = vdwg.mxu0
    %v621 = vmax.f32 %v616, 0.0
    %v622 = vpack.c.bf16 %v621, %v621
    %v623 = vld [vmem:[#allocation11] sm:$0xf]
    %v624 = vld [vmem:[#allocation11 + $0x4] sm:$0xf]
    %v625 = vld [vmem:[#allocation11 + $0x8] sm:$0xf]
    %v626 = vld [vmem:[#allocation11 + $0xc] sm:$0xf]
    %v627 = vld [vmem:[#allocation11 + $0x10] sm:$0xf]
    %v628 = vld [vmem:[#allocation11 + $0x14] sm:$0xf]
    %v629 = vld [vmem:[#allocation11 + $0x18] sm:$0xf]
    %v630 = vld [vmem:[#allocation11 + $0x1c] sm:$0xf]
    %v631 = vld [vmem:[#allocation11 + $0x20] sm:$0xf]
    %v632 = vld [vmem:[#allocation11 + $0x24] sm:$0xf]
    %v633 = vld [vmem:[#allocation11 + $0x28] sm:$0xf]
    %v634 = vld [vmem:[#allocation11 + $0x2c] sm:$0xf]
    %v635 = vld [vmem:[#allocation11 + $0x30] sm:$0xf]
    %v636 = vld [vmem:[#allocation11 + $0x34] sm:$0xf]
    %v637 = vld [vmem:[#allocation11 + $0x38] sm:$0xf]
    %v638 = vld [vmem:[#allocation11 + $0x3c] sm:$0xf]
    %v639 = vld [vmem:[%s10] sm:$0x1]
    %v641 = vlaneseq
    %v642 = vshrl.u32 %v641, 7
    %v643 = vsub.s32 0, %v642
    %v644 = vrot.slane %v639, %v643
    %v662 = vunpack.c.l.b16 %v623
    %v663 = vunpack.c.l.b16 %v624
    %v664 = vunpack.c.l.b16 %v625
    %v665 = vunpack.c.l.b16 %v626
    %v666 = vunpack.c.l.b16 %v627
    %v667 = vunpack.c.l.b16 %v628
    %v668 = vunpack.c.l.b16 %v629
    %v669 = vunpack.c.l.b16 %v630
    %v670 = vunpack.c.l.b16 %v631
    %v671 = vunpack.c.l.b16 %v632
    %v672 = vunpack.c.l.b16 %v633
    %v673 = vunpack.c.l.b16 %v634
    %v674 = vunpack.c.l.b16 %v635
    %v675 = vunpack.c.l.b16 %v636
    %v676 = vunpack.c.l.b16 %v637
    %v677 = vunpack.c.l.b16 %v638
    %v678 = vpack.c.b16 %v663, %v662
    %v679 = vpack.c.b16 %v665, %v664
    %v680 = vpack.c.b16 %v667, %v666
    %v681 = vpack.c.b16 %v669, %v668
    %v682 = vpack.c.b16 %v671, %v670
    %v683 = vpack.c.b16 %v673, %v672
    %v684 = vpack.c.b16 %v675, %v674
    %v685 = vpack.c.b16 %v677, %v676
    %694 = vmatprep.subr.bf16.mxu0 0
    %695 = vmatpush1.bf16.msra.mxu0 %v685
    %696 = vmatprep.subr.bf16.mxu0 0
    %697 = vmatpush1.bf16.msra.mxu0 %v684
    %698 = vmatprep.subr.bf16.mxu0 0
    %699 = vmatpush1.bf16.msra.mxu0 %v683
    %700 = vmatprep.subr.bf16.mxu0 0
    %701 = vmatpush1.bf16.msra.mxu0 %v682
    %702 = vmatprep.subr.bf16.mxu0 0
    %703 = vmatpush1.bf16.msra.mxu0 %v681
    %704 = vmatprep.subr.bf16.mxu0 0
    %705 = vmatpush1.bf16.msra.mxu0 %v680
    %706 = vmatprep.subr.bf16.mxu0 0
    %707 = vmatpush1.bf16.msra.mxu0 %v679
    %708 = vmatprep.subr.bf16.mxu0 0
    %709 = vmatpush1.bf16.msra.mxu0 %v678
    %710 = vmatprep.subr.bf16.mxu0 0
    %711 = vmatpush2.bf16.msra.mxu0 0
    %712 = vmatprep.subr.bf16.mxu0 0
    %713 = vmatpush2.bf16.msra.mxu0 0
    %714 = vmatprep.subr.bf16.mxu0 0
    %715 = vmatpush2.bf16.msra.mxu0 0
    %716 = vmatprep.subr.bf16.mxu0 0
    %717 = vmatpush2.bf16.msra.mxu0 0
    %718 = vmatprep.subr.bf16.mxu0 0
    %719 = vmatpush2.bf16.msra.mxu0 0
    %720 = vmatprep.subr.bf16.mxu0 0
    %721 = vmatpush2.bf16.msra.mxu0 0
    %722 = vmatprep.subr.bf16.mxu0 0
    %723 = vmatpush2.bf16.msra.mxu0 0
    %724 = vmatprep.subr.bf16.mxu0 0
    %725 = vmatpush2.bf16.msra.mxu0 0
    %726 = vmatprep.mubr.bf16.mxu0 0
    %727 = vmatmul.mubr.bf16.gmra.mxu0 %v622
    %v728 = vpop.f32.mrf.mxu0
    %v729 = vadd.f32 %v644, %v728
    %v730 = vpop.f32.mrf.mxu0
    %v731 = vpop.f32.mrf.mxu0
    %v732 = vpop.f32.mrf.mxu0
    %733 = vdwg.mxu0
    %v734 = vpack.c.bf16 %v729, %v729
    %735 = vst [vmem:[#allocation13] sm:$0xf] %v734
    // Predicated region
    $region70: #{tpu_custom_call.1} parent=1 // pred_check
      _
    $region71: #{tpu_custom_call.1} parent=1 // pred_check_branch
      %737 = sbr.rel (0) target = $region73
    $region72: #{tpu_custom_call.1} parent=1 // pred_region
      %s739 = ssub.s32 64, 64
      %740 = vsyncadd [#allocation4], %s739
      %s742 = sshll.u32 [#allocation13], 4
      %s743 = int_to_ptr.vmem [resolvable:$true] %s742
      %745 = dma.vmem_to_hbm [thread:$0]  %s743, 64, %s11, [#allocation4]
    $region73: #{tpu_custom_call.1} parent=1 // pred_fallthru
      _
    // Predicated region
    $region74: #{tpu_custom_call.1} parent=1 // pred_check
      _
    $region75: #{tpu_custom_call.1} parent=1 // pred_check_branch
      %747 = sbr.rel (0) target = $region77
    $region76: #{tpu_custom_call.1} parent=1 // pred_region
      %748 = dma.done [#allocation4], 64
    $region77: #{tpu_custom_call.1} parent=1 // pred_fallthru
      _
    %749 = vsyncpa [#allocation3], 1
    %750 = vsyncpa [#allocation6], 1
    %751 = vsyncpa [#allocation9], 1
    %752 = vsyncpa [#allocation12], 1
    %753 = vsyncpa [#allocation4], 1

</llo_original>
